<compile_context>
chip_gen: v7x
topology: tpu7x:2x2x1
jax: 0.10.0
libtpu: 0.0.40
codegen_flags: <defaults>
</compile_context>

<pallas_src>
import functools

import jax
import jax.numpy as jnp
from jax.experimental import pallas as pl
from jax.experimental.pallas import tpu as pltpu


def _causal_dwconv_kernel(x_ref, w1_ref, b1_ref, w2t_ref, b2_ref, o_ref,
                          prev_ref):
    """One (batch, time-tile) block per grid step.

    x_ref   : (1, tT, D)   current time tile of the (unpadded) input
    w1_ref  : (K, D)  f32  depthwise weights, w1[k, c] = torch weight1[c, 0, k]
    b1_ref  : (1, D)  f32  depthwise bias
    w2t_ref : (D, D)       pointwise weights transposed: w2t[c, d] = weight2[d, c, 0]
    b2_ref  : (1, D)  f32  pointwise bias
    o_ref   : (1, tT, D)   output tile
    prev_ref: (H, D)       carry (input dtype): last H rows of the previous
                           time tile of this batch (H >= K-1, multiple of 8).
                           Zeroed at the first tile of every batch (== causal
                           left-pad).  Requires the time grid axis to run
                           sequentially in increasing order ("arbitrary").
    """
    tT = o_ref.shape[1]
    K = w1_ref.shape[0]
    H = prev_ref.shape[0]
    j = pl.program_id(1)  # time-tile index (innermost grid axis)

    x_in = x_ref[0]                               # (tT, D), input dtype
    w1 = w1_ref[...].astype(jnp.float32)          # (K, D)
    b1 = b1_ref[0, :].astype(jnp.float32)
    b2 = b2_ref[0, :].astype(jnp.float32)

    if K > 1:
        # First tile of each batch: the causal left-pad is a zero halo.
        @pl.when(j == 0)
        def _():
            prev_ref[...] = jnp.zeros_like(prev_ref)

        prev = prev_ref[...]                      # (H, D) previous-tile halo
        x_tail = x_in[tT - H:, :]                 # (H, D) last rows of tile
        prev_ref[...] = x_tail                    # tiny carry store (H rows)

    # ---- depthwise causal conv: bulk pass over the whole tile ----------
    #   y[t, c] = sum_{d=0}^{K-1} w1[K-1-d, c] * x_global[t - d, c] + b1[c]
    # Tap d uses a wrap-around sublane roll (XLU slot): correct for rows
    # t >= d; rows t < d (at most K-1 of them) are fixed up below.
    acc = x_in.astype(jnp.float32) * w1[K - 1, :] + b1
    for d in range(1, K):  # K small & static -> fully unrolled
        rolled = pltpu.roll(x_in, shift=d, axis=0)      # stays in input dtype
        acc = acc + rolled.astype(jnp.float32) * w1[K - 1 - d, :]

    # ---- pointwise (1x1) conv on the MXU (all the FLOPs) ---------------
    z = jnp.dot(acc.astype(w2t_ref.dtype), w2t_ref[...],
                preferred_element_type=jnp.float32) + b2
    o_ref[0] = z.astype(o_ref.dtype)

    if K > 1:
        # ---- halo correction: only the first K-1 (<= H) rows are wrong ----
        # For row t < d, the bulk pass used x_in[t-d+tT] (wrap); the causal
        # value is prev-tile row t-d+tT (zeros at the batch start).  Both
        # live in small (H, D) slabs, so the fix-up is ~8 rows of work.
        row = jax.lax.broadcasted_iota(jnp.int32, (H, x_in.shape[1]), 0)
        corr = jnp.zeros((H, x_in.shape[1]), jnp.float32)
        for d in range(1, K):
            good = pltpu.roll(prev, shift=d, axis=0).astype(jnp.float32)
            bad = pltpu.roll(x_tail, shift=d, axis=0).astype(jnp.float32)
            corr = corr + jnp.where(row < d, (good - bad) * w1[K - 1 - d, :],
                                    0.0)
        acc_top = acc[:H, :] + corr
        z_top = jnp.dot(acc_top.astype(w2t_ref.dtype), w2t_ref[...],
                        preferred_element_type=jnp.float32) + b2
        o_ref[0, pl.ds(0, H), :] = z_top.astype(o_ref.dtype)


def _pick_time_tile(T, requested, min_rows):
    """Largest multiple-of-8 divisor of T that is <= requested (>= min_rows).

    Falls back to a single tile (tT == T, always a legal full-dim block) only
    if no such divisor exists (e.g. T itself is not a multiple of 8).
    """
    req = min(int(requested), T)
    t = (req // 8) * 8
    lo = max(8, min_rows)
    while t >= lo:
        if T % t == 0:
            return t
        t -= 8
    # TODO(synk): masked tail tiles would avoid this full-T fallback for
    # awkward (non multiple-of-8) sequence lengths.
    return T


def _vmem_capacity_bytes():
    """Physical VMEM of the current TPU generation (conservative fallback)."""
    try:
        return int(pltpu.get_tpu_info().vmem_capacity_bytes)
    except Exception:
        return 64 * 1024 * 1024  # v7x floor: safe on every generation


@functools.partial(jax.jit,
                   static_argnames=("kernel_size", "block_t", "use_bf16_mxu"))
def causal_depthwise_conv1d(x, w1, b1, w2, b2, *, kernel_size, block_t=None,
                            use_bf16_mxu=True):
    """x: (B, T, D). Returns (B, T, D) in x.dtype.

    w1: (D, 1, K) depthwise Conv1d weight (torch layout),  b1: (D,)
    w2: (D, D, 1) pointwise Conv1d weight (torch layout),  b2: (D,)
    """
    B, T, D = x.shape
    K = int(kernel_size)
    if K < 1:
        raise ValueError("kernel_size must be >= 1")

    itemsize = jnp.dtype(x.dtype).itemsize
    mxu_dtype = jnp.bfloat16 if use_bf16_mxu else jnp.float32
    mxu_itemsize = jnp.dtype(mxu_dtype).itemsize

    # Carry slab: K-1 halo rows rounded up to a sublane multiple (>= 8).
    halo = max(8, ((K - 1 + 7) // 8) * 8)

    if block_t is None:
        # Target ~1 MiB of input per (tT, D) tile so the ~0.35 us grid-step
        # overhead is amortized; keep M >= 256 for MXU occupancy; cap at 2048.
        block_t = max(256, min(2048, (1 << 20) // max(D * itemsize, 1)))
    block_t = max(int(block_t), halo)

    weights_bytes = D * D * mxu_itemsize + (K + 2) * D * 4
    carry_bytes = halo * D * itemsize

    def footprint(t):
        # double-buffered in/out tiles + (double-buffered) constant weights +
        # carry + in-kernel f32 temporaries (acc, z, rolled/cast copies).
        return (2 * (2 * t * D * itemsize) + 2 * weights_bytes + carry_bytes
                + 4 * t * D * 4)

    cap = int(0.8 * _vmem_capacity_bytes())   # leave headroom for Mosaic

    tT = _pick_time_tile(T, block_t, halo)
    while footprint(tT) > cap:
        smaller = _pick_time_tile(T, max(tT // 2, halo), halo)
        if smaller >= tT:
            break  # cannot legally shrink further; use the full budget
        tT = smaller

    if K - 1 > tT:
        raise ValueError(f"kernel_size-1 ({K - 1}) must be <= time tile {tT}")
    if K > 1 and halo > tT:
        raise ValueError(f"halo ({halo}) exceeds time tile ({tT}); "
                         "sequence too short for this kernel_size")
    nT = T // tT

    vmem_limit = int(min(max(2 * footprint(tT), 32 * 1024 * 1024), cap))

    # Parameter layouts friendly to the kernel (tiny, done once per call).
    w1_kd = jnp.transpose(w1[:, 0, :], (1, 0)).astype(jnp.float32)   # (K, D)
    w2t = jnp.transpose(w2[:, :, 0], (1, 0)).astype(mxu_dtype)       # (D, D)
    b1_2d = b1.reshape(1, D).astype(jnp.float32)
    b2_2d = b2.reshape(1, D).astype(jnp.float32)

    out = pl.pallas_call(
        _causal_dwconv_kernel,
        out_shape=jax.ShapeDtypeStruct((B, T, D), x.dtype),
        grid_spec=pltpu.PrefetchScalarGridSpec(
            num_scalar_prefetch=0,
            grid=(B, nT),
            in_specs=[
                pl.BlockSpec((1, tT, D), lambda b, j: (b, j, 0)),
                pl.BlockSpec((K, D), lambda b, j: (0, 0)),
                pl.BlockSpec((1, D), lambda b, j: (0, 0)),
                pl.BlockSpec((D, D), lambda b, j: (0, 0)),
                pl.BlockSpec((1, D), lambda b, j: (0, 0)),
            ],
            out_specs=pl.BlockSpec((1, tT, D), lambda b, j: (b, j, 0)),
            # Carry: last `halo` rows of the previous tile, in the input dtype.
            scratch_shapes=[pltpu.VMEM((halo, D), x.dtype)],
        ),
        compiler_params=pltpu.CompilerParams(
            # NOTE: the time axis must stay "arbitrary" (sequential, in order)
            # or the halo carry silently breaks causality.
            dimension_semantics=("parallel", "arbitrary"),
            vmem_limit_bytes=vmem_limit),
    )(x, w1_kd, b1_2d, w2t, b2_2d)
    return out


def _reference(x, w1, b1, w2, b2, kernel_size):
    """Pure-JAX reference of the PyTorch forward pass (f32, high precision)."""
    B, T, D = x.shape
    K = kernel_size
    x_pad = jnp.pad(x, ((0, 0), (K - 1, 0), (0, 0)))
    y = jnp.zeros((B, T, D), jnp.float32)
    for k in range(K):
        y = y + x_pad[:, k:k + T, :] * w1[:, 0, k][None, None, :]
    y = y + b1[None, None, :]
    z = jnp.einsum("btc,dc->btd", y, w2[:, :, 0],
                   precision=jax.lax.Precision.HIGHEST) + b2[None, None, :]
    return z


if __name__ == "__main__":
    # Small but kernel-friendly shapes: lane-dense D (multiple of 128) and
    # enough time steps for multiple tiles per batch (exercises the halo
    # carry + correction path when block_t=128).
    B, T, D, K = 2, 256, 128, 3

    key = jax.random.PRNGKey(0)
    kx, k1, kb1, k2, kb2 = jax.random.split(key, 5)

    x = jax.random.normal(kx, (B, T, D), dtype=jnp.float32)
    w1 = jax.random.normal(k1, (D, 1, K), dtype=jnp.float32) * 0.2     # depthwise
    b1 = jax.random.normal(kb1, (D,), dtype=jnp.float32) * 0.1
    w2 = jax.random.normal(k2, (D, D, 1), dtype=jnp.float32) * (1.0 / jnp.sqrt(D))
    b2 = jax.random.normal(kb2, (D,), dtype=jnp.float32) * 0.1

    ref = _reference(x, w1, b1, w2, b2, K)

    # f32-MXU path, forced multi-tile: tight check of tiling / halo carry /
    # halo-correction / causal-pad logic.
    out_f32 = causal_depthwise_conv1d(x, w1, b1, w2, b2, kernel_size=K,
                                      block_t=128, use_bf16_mxu=False)
    out_f32 = jax.block_until_ready(out_f32)
    assert out_f32.shape == (B, T, D)
    assert jnp.allclose(out_f32, ref, atol=5e-3, rtol=5e-3), "f32 path mismatch"

    # Default (auto) tile choice, bf16-MXU path (recommended for v6e/v7x).
    # Note: the depthwise output is cast to bf16 before the 1x1 matmul, so the
    # looser tolerance covers that precision loss vs. the f32 reference.
    out_bf16 = causal_depthwise_conv1d(x, w1, b1, w2, b2, kernel_size=K,
                                       use_bf16_mxu=True)
    out_bf16 = jax.block_until_ready(out_bf16)
    assert jnp.allclose(out_bf16, ref, atol=3e-2, rtol=3e-2), "bf16 path mismatch"

    # bf16-MXU path, forced multi-tile (carry path + bf16 rolls together).
    out_bf16_t = causal_depthwise_conv1d(x, w1, b1, w2, b2, kernel_size=K,
                                         block_t=128, use_bf16_mxu=True)
    out_bf16_t = jax.block_until_ready(out_bf16_t)
    assert jnp.allclose(out_bf16_t, ref, atol=3e-2, rtol=3e-2), \
        "bf16 multi-tile path mismatch"

    print("KERNEL_OK")
</pallas_src>

<mosaic_0001>
module attributes {stable_mosaic.version = 11 : i64} {
  func.func @_causal_dwconv_kernel(%arg0: i32, %arg1: i32, %arg2: memref<1x128x128xf32, #tpu.memory_space<vmem>>, %arg3: memref<3x128xf32, #tpu.memory_space<vmem>>, %arg4: memref<1x128xf32, #tpu.memory_space<vmem>>, %arg5: memref<128x128xf32, #tpu.memory_space<vmem>>, %arg6: memref<1x128xf32, #tpu.memory_space<vmem>>, %arg7: memref<1x128x128xf32, #tpu.memory_space<vmem>>, %arg8: memref<8x128xf32, #tpu.memory_space<vmem>>) attributes {dimension_semantics = [#tpu.dimension_semantics<parallel>, #tpu.dimension_semantics<arbitrary>], iteration_bounds = array<i64: 2, 2>, scalar_prefetch = 0 : i64, scratch_operands = 1 : i64, tpu.core_type = #tpu.core_type<tc>, window_params = [{transform_indices = @transform_0, window_bounds = array<i64: 1, 128, 128>}, {pipeline_mode = #tpu.pipeline_mode<synchronous>, transform_indices = @transform_1, window_bounds = array<i64: 3, 128>}, {pipeline_mode = #tpu.pipeline_mode<synchronous>, transform_indices = @transform_2, window_bounds = array<i64: 1, 128>}, {pipeline_mode = #tpu.pipeline_mode<synchronous>, transform_indices = @transform_3, window_bounds = array<i64: 128, 128>}, {pipeline_mode = #tpu.pipeline_mode<synchronous>, transform_indices = @transform_4, window_bounds = array<i64: 1, 128>}, {transform_indices = @transform_5, window_bounds = array<i64: 1, 128, 128>}]} {
    %c0 = arith.constant 0 : index
    %c0_0 = arith.constant 0 : index
    %c0_1 = arith.constant 0 : index
    %0 = vector.load %arg2[%c0, %c0_0, %c0_1] : memref<1x128x128xf32, #tpu.memory_space<vmem>>, vector<1x128x128xf32>
    %1 = vector.shape_cast %0 : vector<1x128x128xf32> to vector<128x128xf32>
    %c0_2 = arith.constant 0 : index
    %c0_3 = arith.constant 0 : index
    %2 = vector.load %arg3[%c0_2, %c0_3] : memref<3x128xf32, #tpu.memory_space<vmem>>, vector<3x128xf32>
    %c0_4 = arith.constant 0 : index
    %c0_5 = arith.constant 0 : index
    %3 = vector.load %arg4[%c0_4, %c0_5] : memref<1x128xf32, #tpu.memory_space<vmem>>, vector<1x128xf32>
    %4 = vector.shape_cast %3 : vector<1x128xf32> to vector<128xf32>
    %c0_6 = arith.constant 0 : index
    %c0_7 = arith.constant 0 : index
    %5 = vector.load %arg6[%c0_6, %c0_7] : memref<1x128xf32, #tpu.memory_space<vmem>>, vector<1x128xf32>
    %6 = vector.shape_cast %5 : vector<1x128xf32> to vector<128xf32>
    %c0_i32 = arith.constant 0 : i32
    %7 = arith.cmpi eq, %arg1, %c0_i32 : i32
    %8 = arith.extui %7 : i1 to i32
    %c0_i32_8 = arith.constant 0 : i32
    %9 = arith.cmpi ne, %8, %c0_i32_8 : i32
    scf.if %9 {
      %cst_33 = arith.constant 0.000000e+00 : f32
      %81 = vector.broadcast %cst_33 : f32 to vector<8x128xf32>
      %c0_34 = arith.constant 0 : index
      %c0_35 = arith.constant 0 : index
      %82 = vector.load %arg8[%c0_34, %c0_35] : memref<8x128xf32, #tpu.memory_space<vmem>>, vector<8x128xf32>
      tpu.vector_store %arg8[%c0_34, %c0_35], %81 {strides = array<i32>} : memref<8x128xf32, #tpu.memory_space<vmem>>, vector<8x128xf32>,
    } else {
    }
    %c0_9 = arith.constant 0 : index
    %c0_10 = arith.constant 0 : index
    %10 = vector.load %arg8[%c0_9, %c0_10] : memref<8x128xf32, #tpu.memory_space<vmem>>, vector<8x128xf32>
    %11 = vector.extract_strided_slice %1 {offsets = [120, 0], sizes = [8, 128], strides = [1, 1]} : vector<128x128xf32> to vector<8x128xf32>
    %c0_11 = arith.constant 0 : index
    %c0_12 = arith.constant 0 : index
    %12 = vector.load %arg8[%c0_11, %c0_12] : memref<8x128xf32, #tpu.memory_space<vmem>>, vector<8x128xf32>
    tpu.vector_store %arg8[%c0_11, %c0_12], %11 {strides = array<i32>} : memref<8x128xf32, #tpu.memory_space<vmem>>, vector<8x128xf32>,
    %13 = vector.extract_strided_slice %2 {offsets = [2, 0], sizes = [1, 128], strides = [1, 1]} : vector<3x128xf32> to vector<1x128xf32>
    %14 = vector.shape_cast %13 : vector<1x128xf32> to vector<128xf32>
    %15 = vector.shape_cast %14 : vector<128xf32> to vector<1x128xf32>
    %16 = vector.broadcast %15 : vector<1x128xf32> to vector<128x128xf32>
    %17 = arith.mulf %1, %16 : vector<128x128xf32>
    %18 = vector.shape_cast %4 : vector<128xf32> to vector<1x128xf32>
    %19 = vector.broadcast %18 : vector<1x128xf32> to vector<128x128xf32>
    %20 = arith.addf %17, %19 : vector<128x128xf32>
    %c1_i32 = arith.constant 1 : i32
    %21 = tpu.dynamic_rotate %1 by %c1_i32 dim 0 : vector<128x128xf32>, i32 -> vector<128x128xf32>
    %22 = vector.extract_strided_slice %2 {offsets = [1, 0], sizes = [1, 128], strides = [1, 1]} : vector<3x128xf32> to vector<1x128xf32>
    %23 = vector.shape_cast %22 : vector<1x128xf32> to vector<128xf32>
    %24 = vector.shape_cast %23 : vector<128xf32> to vector<1x128xf32>
    %25 = vector.broadcast %24 : vector<1x128xf32> to vector<128x128xf32>
    %26 = arith.mulf %21, %25 : vector<128x128xf32>
    %27 = arith.addf %20, %26 : vector<128x128xf32>
    %c2_i32 = arith.constant 2 : i32
    %28 = tpu.dynamic_rotate %1 by %c2_i32 dim 0 : vector<128x128xf32>, i32 -> vector<128x128xf32>
    %29 = vector.extract_strided_slice %2 {offsets = [0, 0], sizes = [1, 128], strides = [1, 1]} : vector<3x128xf32> to vector<1x128xf32>
    %30 = vector.shape_cast %29 : vector<1x128xf32> to vector<128xf32>
    %31 = vector.shape_cast %30 : vector<128xf32> to vector<1x128xf32>
    %32 = vector.broadcast %31 : vector<1x128xf32> to vector<128x128xf32>
    %33 = arith.mulf %28, %32 : vector<128x128xf32>
    %34 = arith.addf %27, %33 : vector<128x128xf32>
    %c0_13 = arith.constant 0 : index
    %c0_14 = arith.constant 0 : index
    %35 = vector.load %arg5[%c0_13, %c0_14] : memref<128x128xf32, #tpu.memory_space<vmem>>, vector<128x128xf32>
    %cst = arith.constant dense<0.000000e+00> : vector<128x128xf32>
    %36 = tpu.matmul %34, %35, %cst {dimension_numbers = #tpu.dot_dimension_numbers<[1], [0], [0], [1], [0, 0, 1, 1], [], []>} : vector<128x128xf32>, vector<128x128xf32>, vector<128x128xf32> -> vector<128x128xf32>
    %37 = vector.shape_cast %6 : vector<128xf32> to vector<1x128xf32>
    %38 = vector.broadcast %37 : vector<1x128xf32> to vector<128x128xf32>
    %39 = arith.addf %36, %38 : vector<128x128xf32>
    %c0_15 = arith.constant 0 : index
    %c0_16 = arith.constant 0 : index
    %c0_17 = arith.constant 0 : index
    %40 = vector.load %arg7[%c0_15, %c0_16, %c0_17] : memref<1x128x128xf32, #tpu.memory_space<vmem>>, vector<1x128x128xf32>
    %41 = vector.shape_cast %40 : vector<1x128x128xf32> to vector<128x128xf32>
    %42 = vector.shape_cast %39 : vector<128x128xf32> to vector<1x128x128xf32>
    tpu.vector_store %arg7[%c0_15, %c0_16, %c0_17], %42 {strides = array<i32>} : memref<1x128x128xf32, #tpu.memory_space<vmem>>, vector<1x128x128xf32>,
    %43 = tpu.iota {dimensions = array<i32: 0>} : vector<8x128xi32>
    %cst_18 = arith.constant 0.000000e+00 : f32
    %44 = vector.broadcast %cst_18 : f32 to vector<8x128xf32>
    %c1_i32_19 = arith.constant 1 : i32
    %45 = tpu.dynamic_rotate %10 by %c1_i32_19 dim 0 : vector<8x128xf32>, i32 -> vector<8x128xf32>
    %c1_i32_20 = arith.constant 1 : i32
    %46 = tpu.dynamic_rotate %11 by %c1_i32_20 dim 0 : vector<8x128xf32>, i32 -> vector<8x128xf32>
    %c1_i32_21 = arith.constant 1 : i32
    %47 = vector.broadcast %c1_i32_21 : i32 to vector<8x128xi32>
    %48 = arith.cmpi slt, %43, %47 : vector<8x128xi32>
    %49 = arith.subf %45, %46 : vector<8x128xf32>
    %50 = vector.extract_strided_slice %2 {offsets = [1, 0], sizes = [1, 128], strides = [1, 1]} : vector<3x128xf32> to vector<1x128xf32>
    %51 = vector.shape_cast %50 : vector<1x128xf32> to vector<128xf32>
    %52 = vector.shape_cast %51 : vector<128xf32> to vector<1x128xf32>
    %53 = vector.broadcast %52 : vector<1x128xf32> to vector<8x128xf32>
    %54 = arith.mulf %49, %53 : vector<8x128xf32>
    %cst_22 = arith.constant 0.000000e+00 : f32
    %55 = vector.broadcast %cst_22 : f32 to vector<8x128xf32>
    %56 = arith.select %48, %54, %55 : vector<8x128xi1>, vector<8x128xf32>
    %57 = arith.addf %44, %56 : vector<8x128xf32>
    %c2_i32_23 = arith.constant 2 : i32
    %58 = tpu.dynamic_rotate %10 by %c2_i32_23 dim 0 : vector<8x128xf32>, i32 -> vector<8x128xf32>
    %c2_i32_24 = arith.constant 2 : i32
    %59 = tpu.dynamic_rotate %11 by %c2_i32_24 dim 0 : vector<8x128xf32>, i32 -> vector<8x128xf32>
    %c2_i32_25 = arith.constant 2 : i32
    %60 = vector.broadcast %c2_i32_25 : i32 to vector<8x128xi32>
    %61 = arith.cmpi slt, %43, %60 : vector<8x128xi32>
    %62 = arith.subf %58, %59 : vector<8x128xf32>
    %63 = vector.extract_strided_slice %2 {offsets = [0, 0], sizes = [1, 128], strides = [1, 1]} : vector<3x128xf32> to vector<1x128xf32>
    %64 = vector.shape_cast %63 : vector<1x128xf32> to vector<128xf32>
    %65 = vector.shape_cast %64 : vector<128xf32> to vector<1x128xf32>
    %66 = vector.broadcast %65 : vector<1x128xf32> to vector<8x128xf32>
    %67 = arith.mulf %62, %66 : vector<8x128xf32>
    %cst_26 = arith.constant 0.000000e+00 : f32
    %68 = vector.broadcast %cst_26 : f32 to vector<8x128xf32>
    %69 = arith.select %61, %67, %68 : vector<8x128xi1>, vector<8x128xf32>
    %70 = arith.addf %57, %69 : vector<8x128xf32>
    %71 = vector.extract_strided_slice %34 {offsets = [0, 0], sizes = [8, 128], strides = [1, 1]} : vector<128x128xf32> to vector<8x128xf32>
    %72 = arith.addf %71, %70 : vector<8x128xf32>
    %c0_27 = arith.constant 0 : index
    %c0_28 = arith.constant 0 : index
    %73 = vector.load %arg5[%c0_27, %c0_28] : memref<128x128xf32, #tpu.memory_space<vmem>>, vector<128x128xf32>
    %cst_29 = arith.constant dense<0.000000e+00> : vector<8x128xf32>
    %74 = tpu.matmul %72, %73, %cst_29 {dimension_numbers = #tpu.dot_dimension_numbers<[1], [0], [0], [1], [0, 0, 1, 1], [], []>} : vector<8x128xf32>, vector<128x128xf32>, vector<8x128xf32> -> vector<8x128xf32>
    %75 = vector.shape_cast %6 : vector<128xf32> to vector<1x128xf32>
    %76 = vector.broadcast %75 : vector<1x128xf32> to vector<8x128xf32>
    %77 = arith.addf %74, %76 : vector<8x128xf32>
    %c0_30 = arith.constant 0 : index
    %c0_31 = arith.constant 0 : index
    %c0_32 = arith.constant 0 : index
    %78 = vector.load %arg7[%c0_30, %c0_31, %c0_32] : memref<1x128x128xf32, #tpu.memory_space<vmem>>, vector<1x8x128xf32>
    %79 = vector.shape_cast %78 : vector<1x8x128xf32> to vector<8x128xf32>
    %80 = vector.shape_cast %77 : vector<8x128xf32> to vector<1x8x128xf32>
    tpu.vector_store %arg7[%c0_30, %c0_31, %c0_32], %80 {strides = array<i32>} : memref<1x128x128xf32, #tpu.memory_space<vmem>>, vector<1x8x128xf32>,
    return
  }
  func.func @transform_0(%arg0: i32, %arg1: i32) -> (i32, i32, i32) {
    %c0_i32 = arith.constant 0 : i32
    %c0_i32_0 = arith.constant 0 : i32
    return %arg0, %arg1, %c0_i32 : i32, i32, i32
  }
  func.func @transform_1(%arg0: i32, %arg1: i32) -> (i32, i32) {
    %c0_i32 = arith.constant 0 : i32
    %c0_i32_0 = arith.constant 0 : i32
    %c0_i32_1 = arith.constant 0 : i32
    return %c0_i32, %c0_i32_0 : i32, i32
  }
  func.func @transform_2(%arg0: i32, %arg1: i32) -> (i32, i32) {
    %c0_i32 = arith.constant 0 : i32
    %c0_i32_0 = arith.constant 0 : i32
    %c0_i32_1 = arith.constant 0 : i32
    return %c0_i32, %c0_i32_0 : i32, i32
  }
  func.func @transform_3(%arg0: i32, %arg1: i32) -> (i32, i32) {
    %c0_i32 = arith.constant 0 : i32
    %c0_i32_0 = arith.constant 0 : i32
    %c0_i32_1 = arith.constant 0 : i32
    return %c0_i32, %c0_i32_0 : i32, i32
  }
  func.func @transform_4(%arg0: i32, %arg1: i32) -> (i32, i32) {
    %c0_i32 = arith.constant 0 : i32
    %c0_i32_0 = arith.constant 0 : i32
    %c0_i32_1 = arith.constant 0 : i32
    return %c0_i32, %c0_i32_0 : i32, i32
  }
  func.func @transform_5(%arg0: i32, %arg1: i32) -> (i32, i32, i32) {
    %c0_i32 = arith.constant 0 : i32
    %c0_i32_0 = arith.constant 0 : i32
    return %arg0, %arg1, %c0_i32 : i32, i32, i32
  }
}

</mosaic_0001>

<llo_original>
// kernel: causal_depthwise_conv1d.1
$region0: #{causal_depthwise_conv1d.1}
  #allocation0 [shape = 'u32[]', space=smem, size = 0x4, offset = 0x4, fixed_abs, tag = 'smem constant byte address 0x4 - core index']
  #allocation1 [shape = 'u32[144,128]{1,0:T(1,128)}', space=vmem, size = 0x12000, scoped, tag = 'internal scratch']
  #allocation2 [shape = 'f32[8,128]{1,0:T(8,128)}', space=vmem, size = 0x1000, scoped, tag = 'scratch operand']
  %s0 = inlined_call_operand.hbm [shape: f32[2,256,128], index: 0, kind: input, shape index: {}]
  %s1 = inlined_call_operand.vmem [shape: f32[3,128], index: 1, kind: input, shape index: {}]
  %s2 = inlined_call_operand.vmem [shape: f32[1,128], index: 2, kind: input, shape index: {}]
  %s3 = inlined_call_operand.vmem [shape: f32[128,128], index: 3, kind: input, shape index: {}]
  %s4 = inlined_call_operand.vmem [shape: f32[1,128], index: 4, kind: input, shape index: {}]
  %s5 = inlined_call_operand.hbm [shape: f32[2,256,128], index: 5, kind: output, shape index: {}]
  %s6 = sld [smem:[#allocation0]]
  $region61: #{causal_depthwise_conv1d.1} parent=0
    _
  %s8 = ssub.s32 1, %s6
  %s9 = scalar_select 0, %s8, %s6
  $region1: #{causal_depthwise_conv1d.1} parent=0
    #allocation3 [shape = 'u8[131072]{0}', space=vmem, size = 0x20000, scoped, tag = 'input window, operand 0']
    #allocation4 [shape = 's32[2]{0}', space=sflag, size = 0x8, scoped, tag = 'scoped memory for causal_depthwise_conv1d.1']
    #allocation5 [shape = 's32[2]{0}', space=sflag, size = 0x8, scoped, tag = 'scoped memory for causal_depthwise_conv1d.1']
    #allocation6 [shape = 'u8[131072]{0}', space=vmem, size = 0x20000, scoped, tag = 'output window, operand 0']
    %10 = vsyncpa [#allocation4], 0
    %s11 = scalar_lea.sflag [#allocation4], 1
    %12 = vsyncpa %s11, 0
    %13 = vsyncpa [#allocation5], 0
    %s14 = scalar_lea.sflag [#allocation5], 1
    %15 = vsyncpa %s14, 0
    loop: start=0, step=1, limit=6
    $region2: #{causal_depthwise_conv1d.1} parent=1 // loop_pre_header
      _
    $region3: #{causal_depthwise_conv1d.1} parent=1 // loop_header
      %s17 = sphi 0, %s21
      %p18 = scmp.ge.s32.totalorder %s17, 6
      %s24 = sphi 0, %s36
      %s25 = sphi 0, %s32
      %s26 = sphi 0, %s24
      %s27 = sphi 0, %s25
      %s28 = sphi 0, %s26
      %s29 = sphi 0, %s27
      %s41 = sphi 0, %s43
      %s44 = sphi 0, %s41
      %s45 = sphi 0, %s44
      %s61 = sphi 0, %s45
      %s65 = sphi 0, %s65
      %s67 = sphi 0, %s65
      %s68 = sphi 0, %s67
      %s82 = sphi 0, %s68
      %s86 = sphi 0, %s86
      %s88 = sphi 0, %s86
      %s89 = sphi 0, %s88
      %s103 = sphi 0, %s89
      %s107 = sphi 0, %s107
      %s109 = sphi 0, %s107
      %s110 = sphi 0, %s109
      %s124 = sphi 0, %s110
      %s128 = sphi 0, %s128
      %s130 = sphi 0, %s128
      %s131 = sphi 0, %s130
      %s145 = sphi 0, %s131
      %s153 = sphi 0, %s155
      %s156 = sphi 0, %s153
      %s157 = sphi 0, %s156
      %s173 = sphi 0, %s157
    $region4: #{causal_depthwise_conv1d.1} parent=1 // loop_header_branch
      %20 = sbr.rel (%p18) target = $region8
    $region5: #{causal_depthwise_conv1d.1} parent=1 // loop_body
      %s22 = ssub.s32 %s17, 1
      %s23 = ssub.s32 %s17, 2
      %s30 = sadd.s32 1, %s25
      %p31 = scmp.ge.s32.totalorder %s30, 2
      %s32 = scalar_select %p31, 0, %s30
      %s33 = sadd.s32 1, %s24
      %s34 = scalar_select %p31, %s33, %s24
      %p35 = scmp.ge.s32.totalorder %s34, 2
      %s36 = scalar_select %p35, 0, %s34
      %s37 = ssub.s32 %s24, %s36
      %s38 = ssub.s32 %s25, %s32
      %s39 = sor.u32 %s37, %s38
      %p40 = scmp.eq.s32.totalorder %s39, 0
      %s42 = sadd.s32 %s41, 1
      %s43 = scalar_select %p40, %s41, %s42
      %p46 = pneg %p40
      %p47 = scmp.eq.s32.totalorder %s17, 3
      %p48 = por %p46, %p47
      %p49 = scmp.ne.s32.totalorder %s41, %s44
      %p50 = scmp.eq.s32.totalorder %s17, 0
      %p51 = por %p49, %p50
      %p52 = scmp.ne.s32.totalorder %s41, %s44
      %p53 = scmp.eq.s32.totalorder %s22, 3
      %p54 = por %p52, %p53
      %p55 = scmp.ne.s32.totalorder %s44, %s45
      %p56 = scmp.eq.s32.totalorder %s22, 0
      %p57 = por %p55, %p56
      %p58 = scmp.ne.s32.totalorder %s44, %s45
      %p59 = scmp.eq.s32.totalorder %s23, 3
      %p60 = por %p58, %p59
      %p62 = scmp.ne.s32.totalorder %s45, %s61
      %p63 = scmp.eq.s32.totalorder %s23, 0
      %p64 = por %p62, %p63
      %s66 = sadd.s32 %s65, 1
      %p69 = scmp.eq.s32.totalorder %s17, 3
      %p70 = scmp.ne.s32.totalorder %s65, %s67
      %p71 = scmp.eq.s32.totalorder %s17, 0
      %p72 = por %p70, %p71
      %p73 = scmp.ne.s32.totalorder %s65, %s67
      %p74 = scmp.eq.s32.totalorder %s22, 3
      %p75 = por %p73, %p74
      %p76 = scmp.ne.s32.totalorder %s67, %s68
      %p77 = scmp.eq.s32.totalorder %s22, 0
      %p78 = por %p76, %p77
      %p79 = scmp.ne.s32.totalorder %s67, %s68
      %p80 = scmp.eq.s32.totalorder %s23, 3
      %p81 = por %p79, %p80
      %p83 = scmp.ne.s32.totalorder %s68, %s82
      %p84 = scmp.eq.s32.totalorder %s23, 0
      %p85 = por %p83, %p84
      %s87 = sadd.s32 %s86, 1
      %p90 = scmp.eq.s32.totalorder %s17, 3
      %p91 = scmp.ne.s32.totalorder %s86, %s88
      %p92 = scmp.eq.s32.totalorder %s17, 0
      %p93 = por %p91, %p92
      %p94 = scmp.ne.s32.totalorder %s86, %s88
      %p95 = scmp.eq.s32.totalorder %s22, 3
      %p96 = por %p94, %p95
      %p97 = scmp.ne.s32.totalorder %s88, %s89
      %p98 = scmp.eq.s32.totalorder %s22, 0
      %p99 = por %p97, %p98
      %p100 = scmp.ne.s32.totalorder %s88, %s89
      %p101 = scmp.eq.s32.totalorder %s23, 3
      %p102 = por %p100, %p101
      %p104 = scmp.ne.s32.totalorder %s89, %s103
      %p105 = scmp.eq.s32.totalorder %s23, 0
      %p106 = por %p104, %p105
      %s108 = sadd.s32 %s107, 1
      %p111 = scmp.eq.s32.totalorder %s17, 3
      %p112 = scmp.ne.s32.totalorder %s107, %s109
      %p113 = scmp.eq.s32.totalorder %s17, 0
      %p114 = por %p112, %p113
      %p115 = scmp.ne.s32.totalorder %s107, %s109
      %p116 = scmp.eq.s32.totalorder %s22, 3
      %p117 = por %p115, %p116
      %p118 = scmp.ne.s32.totalorder %s109, %s110
      %p119 = scmp.eq.s32.totalorder %s22, 0
      %p120 = por %p118, %p119
      %p121 = scmp.ne.s32.totalorder %s109, %s110
      %p122 = scmp.eq.s32.totalorder %s23, 3
      %p123 = por %p121, %p122
      %p125 = scmp.ne.s32.totalorder %s110, %s124
      %p126 = scmp.eq.s32.totalorder %s23, 0
      %p127 = por %p125, %p126
      %s129 = sadd.s32 %s128, 1
      %p132 = scmp.eq.s32.totalorder %s17, 3
      %p133 = scmp.ne.s32.totalorder %s128, %s130
      %p134 = scmp.eq.s32.totalorder %s17, 0
      %p135 = por %p133, %p134
      %p136 = scmp.ne.s32.totalorder %s128, %s130
      %p137 = scmp.eq.s32.totalorder %s22, 3
      %p138 = por %p136, %p137
      %p139 = scmp.ne.s32.totalorder %s130, %s131
      %p140 = scmp.eq.s32.totalorder %s22, 0
      %p141 = por %p139, %p140
      %p142 = scmp.ne.s32.totalorder %s130, %s131
      %p143 = scmp.eq.s32.totalorder %s23, 3
      %p144 = por %p142, %p143
      %p146 = scmp.ne.s32.totalorder %s131, %s145
      %p147 = scmp.eq.s32.totalorder %s23, 0
      %p148 = por %p146, %p147
      %s149 = ssub.s32 %s24, %s36
      %s150 = ssub.s32 %s25, %s32
      %s151 = sor.u32 %s149, %s150
      %p152 = scmp.eq.s32.totalorder %s151, 0
      %s154 = sadd.s32 %s153, 1
      %s155 = scalar_select %p152, %s153, %s154
      %p158 = pneg %p152
      %p159 = scmp.eq.s32.totalorder %s17, 3
      %p160 = por %p158, %p159
      %p161 = scmp.ne.s32.totalorder %s153, %s156
      %p162 = scmp.eq.s32.totalorder %s17, 0
      %p163 = por %p161, %p162
      %p164 = scmp.ne.s32.totalorder %s153, %s156
      %p165 = scmp.eq.s32.totalorder %s22, 3
      %p166 = por %p164, %p165
      %p167 = scmp.ne.s32.totalorder %s156, %s157
      %p168 = scmp.eq.s32.totalorder %s22, 0
      %p169 = por %p167, %p168
      %p170 = scmp.ne.s32.totalorder %s156, %s157
      %p171 = scmp.eq.s32.totalorder %s23, 3
      %p172 = por %p170, %p171
      %p174 = scmp.ne.s32.totalorder %s157, %s173
      %p175 = scmp.eq.s32.totalorder %s23, 0
      %p176 = por %p174, %p175
      %p177 = scmp.le.s32.totalorder 1, %s17
      %p178 = scmp.lt.s32.totalorder %s17, 5
      %p179 = pnand %p177, %p178
      %p180 = pneg %p179
      // Predicated region
      $region9: #{causal_depthwise_conv1d.1} parent=5 // pred_check
        _
      $region10: #{causal_depthwise_conv1d.1} parent=5 // pred_check_branch
        %182 = sbr.rel (%p179) target = $region12
      $region11: #{causal_depthwise_conv1d.1} parent=5 // pred_region
        %s183 = ssub.s32 %s17, 1
        // Predicated region
        $region13: #{causal_depthwise_conv1d.1} parent=11 // pred_check
          %p184 = pneg %p78
        $region14: #{causal_depthwise_conv1d.1} parent=11 // pred_check_branch
          %186 = sbr.rel (%p184) target = $region16
        $region15: #{causal_depthwise_conv1d.1} parent=11 // pred_region
          _
        $region16: #{causal_depthwise_conv1d.1} parent=11 // pred_fallthru
          _
        // Predicated region
        $region17: #{causal_depthwise_conv1d.1} parent=11 // pred_check
          %p187 = pneg %p99
        $region18: #{causal_depthwise_conv1d.1} parent=11 // pred_check_branch
          %189 = sbr.rel (%p187) target = $region20
        $region19: #{causal_depthwise_conv1d.1} parent=11 // pred_region
          _
        $region20: #{causal_depthwise_conv1d.1} parent=11 // pred_fallthru
          _
        // Predicated region
        $region21: #{causal_depthwise_conv1d.1} parent=11 // pred_check
          %p190 = pneg %p120
        $region22: #{causal_depthwise_conv1d.1} parent=11 // pred_check_branch
          %192 = sbr.rel (%p190) target = $region24
        $region23: #{causal_depthwise_conv1d.1} parent=11 // pred_region
          _
        $region24: #{causal_depthwise_conv1d.1} parent=11 // pred_fallthru
          _
        // Predicated region
        $region25: #{causal_depthwise_conv1d.1} parent=11 // pred_check
          %p193 = pneg %p141
        $region26: #{causal_depthwise_conv1d.1} parent=11 // pred_check_branch
          %195 = sbr.rel (%p193) target = $region28
        $region27: #{causal_depthwise_conv1d.1} parent=11 // pred_region
          _
        $region28: #{causal_depthwise_conv1d.1} parent=11 // pred_fallthru
          _
      $region12: #{causal_depthwise_conv1d.1} parent=5 // pred_fallthru
        _
      %p196 = scmp.lt.s32.totalorder %s17, 4
      // Predicated region
      $region29: #{causal_depthwise_conv1d.1} parent=5 // pred_check
        %p197 = pneg %p196
      $region30: #{causal_depthwise_conv1d.1} parent=5 // pred_check_branch
        %199 = sbr.rel (%p197) target = $region32
      $region31: #{causal_depthwise_conv1d.1} parent=5 // pred_region
        // Predicated region
        $region33: #{causal_depthwise_conv1d.1} parent=31 // pred_check
          %p200 = pneg %p51
        $region34: #{causal_depthwise_conv1d.1} parent=31 // pred_check_branch
          %202 = sbr.rel (%p200) target = $region36
        $region35: #{causal_depthwise_conv1d.1} parent=31 // pred_region
          %s203 = sand.u32 %s41, 1
          %s204 = scalar_lea.sflag [#allocation4], %s203
          %s205 = sand.u32 %s41, 1
          %s206 = smul.addr %s205, 128
          %s207 = scalar_lea.vmem [#allocation3], %s206
          %s208 = smul.u32 16, %s25
          %s210 = ssub.s32 2048, 2048
          %211 = vsyncadd %s204, %s210
          %s212 = smul.addr %s24, 32
          %s213 = sadd.s32 %s208, %s212
          %s214 = smul.addr %s213, 128
          %s215 = scalar_lea.hbm %s0, %s214
          %s216 = sshll.u32 %s207, 4
          %s217 = int_to_ptr.vmem [resolvable:$true] %s216
          %222 = dma.hbm_to_vmem [thread:$0]  %s215, 2048, %s217, %s204, 128, 128, 8
        $region36: #{causal_depthwise_conv1d.1} parent=31 // pred_fallthru
          _
      $region32: #{causal_depthwise_conv1d.1} parent=5 // pred_fallthru
        _
      %p223 = scmp.le.s32.totalorder 1, %s17
      %p224 = scmp.lt.s32.totalorder %s17, 5
      %p225 = pnand %p223, %p224
      %p226 = pneg %p225
      // Predicated region
      $region37: #{causal_depthwise_conv1d.1} parent=5 // pred_check
        _
      $region38: #{causal_depthwise_conv1d.1} parent=5 // pred_check_branch
        %228 = sbr.rel (%p225) target = $region40
      $region39: #{causal_depthwise_conv1d.1} parent=5 // pred_region
        %s229 = ssub.s32 %s17, 1
        %s230 = sand.u32 %s44, 1
        %s231 = scalar_lea.sflag [#allocation4], %s230
        %s232 = sand.u32 %s44, 1
        %s233 = smul.addr %s232, 128
        %s234 = scalar_lea.vmem [#allocation3], %s233
        // Predicated region
        $region41: #{causal_depthwise_conv1d.1} parent=39 // pred_check
          %p235 = pneg %p57
        $region42: #{causal_depthwise_conv1d.1} parent=39 // pred_check_branch
          %237 = sbr.rel (%p235) target = $region44
        $region43: #{causal_depthwise_conv1d.1} parent=39 // pred_region
          %238 = dma.done %s231, 2048
        $region44: #{causal_depthwise_conv1d.1} parent=39 // pred_fallthru
          _
        %s239 = sand.u32 %s44, 1
        %s240 = scalar_lea.sflag [#allocation4], %s239
        %s241 = sand.u32 %s44, 1
        %s242 = smul.addr %s241, 128
        %s243 = scalar_lea.vmem [#allocation3], %s242
        %p244 = pneg %p57
        %p245 = pneg %p54
        %p246 = pneg %p78
        %p247 = pneg %p75
        %p248 = pneg %p99
        %p249 = pneg %p96
        %p250 = pneg %p120
        %p251 = pneg %p117
        %p252 = pneg %p141
        %p253 = pneg %p138
        %p254 = pneg %p169
        %p255 = pneg %p166
        %s256 = sand.u32 %s156, 1
        %s257 = scalar_lea.sflag [#allocation5], %s256
        %s258 = sand.u32 %s156, 1
        %s259 = smul.addr %s258, 128
        %s260 = scalar_lea.vmem [#allocation6], %s259
        %s261 = smul.u32 16, %s27
        %s262 = smul.u32 16, %s27
        %v263 = vld [vmem:[%s234] sm:$0xff]
        %v264 = vld [vmem:[%s234 + $0x8] sm:$0xff]
        %v265 = vld [vmem:[%s234 + $0x10] sm:$0xff]
        %v266 = vld [vmem:[%s234 + $0x18] sm:$0xff]
        %v267 = vld [vmem:[%s234 + $0x20] sm:$0xff]
        %v268 = vld [vmem:[%s234 + $0x28] sm:$0xff]
        %v269 = vld [vmem:[%s234 + $0x30] sm:$0xff]
        %v270 = vld [vmem:[%s234 + $0x38] sm:$0xff]
        %v271 = vld [vmem:[%s234 + $0x40] sm:$0xff]
        %v272 = vld [vmem:[%s234 + $0x48] sm:$0xff]
        %v273 = vld [vmem:[%s234 + $0x50] sm:$0xff]
        %v274 = vld [vmem:[%s234 + $0x58] sm:$0xff]
        %v275 = vld [vmem:[%s234 + $0x60] sm:$0xff]
        %v276 = vld [vmem:[%s234 + $0x68] sm:$0xff]
        %v277 = vld [vmem:[%s234 + $0x70] sm:$0xff]
        %v278 = vld [vmem:[%s234 + $0x78] sm:$0xff]
        %v279 = vld [vmem:[%s1] sm:$0x7]
        %v280 = vld [vmem:[%s2] sm:$0x1]
        %v281 = vld [vmem:[%s4] sm:$0x1]
        %p282 = scmp.eq.s32.totalorder %s27, 0
        // Predicated region
        $region45: #{causal_depthwise_conv1d.1} parent=39 // pred_check
          %p283 = pneg %p282
        $region46: #{causal_depthwise_conv1d.1} parent=39 // pred_check_branch
          %285 = sbr.rel (%p283) target = $region48
        $region47: #{causal_depthwise_conv1d.1} parent=39 // pred_region
          %286 = vst [vmem:[#allocation2] sm:$0xff] 0.0
        $region48: #{causal_depthwise_conv1d.1} parent=39 // pred_fallthru
          _
        %v287 = vld [vmem:[#allocation2] sm:$0xff]
        %288 = vst [vmem:[#allocation2] sm:$0xff] %v278
        %v289 = vlaneseq
        %v290 = vshrl.u32 %v289, 7
        %v291 = vsub.s32 2, %v290
        %v292 = vrot.slane %v279, %v291
        %v293 = vmul.f32 %v263, %v292
        %v294 = vmul.f32 %v264, %v292
        %v295 = vmul.f32 %v265, %v292
        %v296 = vmul.f32 %v266, %v292
        %v297 = vmul.f32 %v267, %v292
        %v298 = vmul.f32 %v268, %v292
        %v299 = vmul.f32 %v269, %v292
        %v300 = vmul.f32 %v270, %v292
        %v301 = vmul.f32 %v271, %v292
        %v302 = vmul.f32 %v272, %v292
        %v303 = vmul.f32 %v273, %v292
        %v304 = vmul.f32 %v274, %v292
        %v305 = vmul.f32 %v275, %v292
        %v306 = vmul.f32 %v276, %v292
        %v307 = vmul.f32 %v277, %v292
        %v308 = vmul.f32 %v278, %v292
        %v310 = vlaneseq
        %v311 = vshrl.u32 %v310, 7
        %v312 = vsub.s32 0, %v311
        %v313 = vrot.slane %v280, %v312
        %v315 = vadd.f32 %v293, %v313
        %v316 = vadd.f32 %v294, %v313
        %v317 = vadd.f32 %v295, %v313
        %v318 = vadd.f32 %v296, %v313
        %v319 = vadd.f32 %v297, %v313
        %v320 = vadd.f32 %v298, %v313
        %v321 = vadd.f32 %v299, %v313
        %v322 = vadd.f32 %v300, %v313
        %v323 = vadd.f32 %v301, %v313
        %v324 = vadd.f32 %v302, %v313
        %v325 = vadd.f32 %v303, %v313
        %v326 = vadd.f32 %v304, %v313
        %v327 = vadd.f32 %v305, %v313
        %v328 = vadd.f32 %v306, %v313
        %v329 = vadd.f32 %v307, %v313
        %v330 = vadd.f32 %v308, %v313
        %v331 = vrot.slane %v263, 7
        %v332 = vrot.slane %v264, 7
        %v333 = vrot.slane %v265, 7
        %v334 = vrot.slane %v266, 7
        %v335 = vrot.slane %v267, 7
        %v336 = vrot.slane %v268, 7
        %v337 = vrot.slane %v269, 7
        %v338 = vrot.slane %v270, 7
        %v339 = vrot.slane %v271, 7
        %v340 = vrot.slane %v272, 7
        %v341 = vrot.slane %v273, 7
        %v342 = vrot.slane %v274, 7
        %v343 = vrot.slane %v275, 7
        %v344 = vrot.slane %v276, 7
        %v345 = vrot.slane %v277, 7
        %v346 = vrot.slane %v278, 7
        %v347 = vlaneseq
        %v348 = vshrl.u32 %v347, 7
        %vm349 = vcmp.lt.s32.totalorder %v348, 1
        %v350 = vsel %vm349, %v345, %v346
        %v351 = vsel %vm349, %v344, %v345
        %v352 = vsel %vm349, %v343, %v344
        %v353 = vsel %vm349, %v342, %v343
        %v354 = vsel %vm349, %v341, %v342
        %v355 = vsel %vm349, %v340, %v341
        %v356 = vsel %vm349, %v339, %v340
        %v357 = vsel %vm349, %v338, %v339
        %v358 = vsel %vm349, %v337, %v338
        %v359 = vsel %vm349, %v336, %v337
        %v360 = vsel %vm349, %v335, %v336
        %v361 = vsel %vm349, %v334, %v335
        %v362 = vsel %vm349, %v333, %v334
        %v363 = vsel %vm349, %v332, %v333
        %v364 = vsel %vm349, %v331, %v332
        %v365 = vsel %vm349, %v346, %v331
        %v366 = vlaneseq
        %v367 = vshrl.u32 %v366, 7
        %v368 = vsub.s32 1, %v367
        %v369 = vrot.slane %v279, %v368
        %v370 = vmul.f32 %v365, %v369
        %v371 = vmul.f32 %v364, %v369
        %v372 = vmul.f32 %v363, %v369
        %v373 = vmul.f32 %v362, %v369
        %v374 = vmul.f32 %v361, %v369
        %v375 = vmul.f32 %v360, %v369
        %v376 = vmul.f32 %v359, %v369
        %v377 = vmul.f32 %v358, %v369
        %v378 = vmul.f32 %v357, %v369
        %v379 = vmul.f32 %v356, %v369
        %v380 = vmul.f32 %v355, %v369
        %v381 = vmul.f32 %v354, %v369
        %v382 = vmul.f32 %v353, %v369
        %v383 = vmul.f32 %v352, %v369
        %v384 = vmul.f32 %v351, %v369
        %v385 = vmul.f32 %v350, %v369
        %v386 = vadd.f32 %v315, %v370
        %v387 = vadd.f32 %v316, %v371
        %v388 = vadd.f32 %v317, %v372
        %v389 = vadd.f32 %v318, %v373
        %v390 = vadd.f32 %v319, %v374
        %v391 = vadd.f32 %v320, %v375
        %v392 = vadd.f32 %v321, %v376
        %v393 = vadd.f32 %v322, %v377
        %v394 = vadd.f32 %v323, %v378
        %v395 = vadd.f32 %v324, %v379
        %v396 = vadd.f32 %v325, %v380
        %v397 = vadd.f32 %v326, %v381
        %v398 = vadd.f32 %v327, %v382
        %v399 = vadd.f32 %v328, %v383
        %v400 = vadd.f32 %v329, %v384
        %v401 = vadd.f32 %v330, %v385
        %v402 = vrot.slane %v263, 6
        %v403 = vrot.slane %v264, 6
        %v404 = vrot.slane %v265, 6
        %v405 = vrot.slane %v266, 6
        %v406 = vrot.slane %v267, 6
        %v407 = vrot.slane %v268, 6
        %v408 = vrot.slane %v269, 6
        %v409 = vrot.slane %v270, 6
        %v410 = vrot.slane %v271, 6
        %v411 = vrot.slane %v272, 6
        %v412 = vrot.slane %v273, 6
        %v413 = vrot.slane %v274, 6
        %v414 = vrot.slane %v275, 6
        %v415 = vrot.slane %v276, 6
        %v416 = vrot.slane %v277, 6
        %v417 = vrot.slane %v278, 6
        %vm418 = vcmp.lt.s32.totalorder %v348, 2
        %v419 = vsel %vm418, %v416, %v417
        %v420 = vsel %vm418, %v415, %v416
        %v421 = vsel %vm418, %v414, %v415
        %v422 = vsel %vm418, %v413, %v414
        %v423 = vsel %vm418, %v412, %v413
        %v424 = vsel %vm418, %v411, %v412
        %v425 = vsel %vm418, %v410, %v411
        %v426 = vsel %vm418, %v409, %v410
        %v427 = vsel %vm418, %v408, %v409
        %v428 = vsel %vm418, %v407, %v408
        %v429 = vsel %vm418, %v406, %v407
        %v430 = vsel %vm418, %v405, %v406
        %v431 = vsel %vm418, %v404, %v405
        %v432 = vsel %vm418, %v403, %v404
        %v433 = vsel %vm418, %v402, %v403
        %v434 = vsel %vm418, %v417, %v402
        %v435 = vlaneseq
        %v436 = vshrl.u32 %v435, 7
        %v437 = vsub.s32 0, %v436
        %v438 = vrot.slane %v279, %v437
        %v439 = vmul.f32 %v434, %v438
        %v440 = vmul.f32 %v433, %v438
        %v441 = vmul.f32 %v432, %v438
        %v442 = vmul.f32 %v431, %v438
        %v443 = vmul.f32 %v430, %v438
        %v444 = vmul.f32 %v429, %v438
        %v445 = vmul.f32 %v428, %v438
        %v446 = vmul.f32 %v427, %v438
        %v447 = vmul.f32 %v426, %v438
        %v448 = vmul.f32 %v425, %v438
        %v449 = vmul.f32 %v424, %v438
        %v450 = vmul.f32 %v423, %v438
        %v451 = vmul.f32 %v422, %v438
        %v452 = vmul.f32 %v421, %v438
        %v453 = vmul.f32 %v420, %v438
        %v454 = vmul.f32 %v419, %v438
        %v455 = vadd.f32 %v386, %v439
        %v456 = vadd.f32 %v387, %v440
        %v457 = vadd.f32 %v388, %v441
        %v458 = vadd.f32 %v389, %v442
        %v459 = vadd.f32 %v390, %v443
        %v460 = vadd.f32 %v391, %v444
        %v461 = vadd.f32 %v392, %v445
        %v462 = vadd.f32 %v393, %v446
        %v463 = vadd.f32 %v394, %v447
        %v464 = vadd.f32 %v395, %v448
        %v465 = vadd.f32 %v396, %v449
        %v466 = vadd.f32 %v397, %v450
        %v467 = vadd.f32 %v398, %v451
        %v468 = vadd.f32 %v399, %v452
        %v469 = vadd.f32 %v400, %v453
        %v470 = vadd.f32 %v401, %v454
        %v471 = vld [vmem:[%s3] sm:$0xff]
        %v472 = vld [vmem:[%s3 + $0x8] sm:$0xff]
        %v473 = vld [vmem:[%s3 + $0x10] sm:$0xff]
        %v474 = vld [vmem:[%s3 + $0x18] sm:$0xff]
        %v475 = vld [vmem:[%s3 + $0x20] sm:$0xff]
        %v476 = vld [vmem:[%s3 + $0x28] sm:$0xff]
        %v477 = vld [vmem:[%s3 + $0x30] sm:$0xff]
        %v478 = vld [vmem:[%s3 + $0x38] sm:$0xff]
        %v479 = vld [vmem:[%s3 + $0x40] sm:$0xff]
        %v480 = vld [vmem:[%s3 + $0x48] sm:$0xff]
        %v481 = vld [vmem:[%s3 + $0x50] sm:$0xff]
        %v482 = vld [vmem:[%s3 + $0x58] sm:$0xff]
        %v483 = vld [vmem:[%s3 + $0x60] sm:$0xff]
        %v484 = vld [vmem:[%s3 + $0x68] sm:$0xff]
        %v485 = vld [vmem:[%s3 + $0x70] sm:$0xff]
        %v486 = vld [vmem:[%s3 + $0x78] sm:$0xff]
        %v488 = vlaneseq
        %v489 = vshrl.u32 %v488, 7
        %v490 = vsub.s32 0, %v489
        %v491 = vrot.slane %v281, %v490
        %493 = vmatprep.subr.mxu0 0.0
        %494 = vmatpush1.msra.mxu0 %v471
        %495 = vmatprep.subr.mxu0 0.0
        %496 = vmatpush1.msra.mxu0 %v472
        %497 = vmatprep.subr.mxu0 0.0
        %498 = vmatpush1.msra.mxu0 %v473
        %499 = vmatprep.subr.mxu0 0.0
        %500 = vmatpush1.msra.mxu0 %v474
        %501 = vmatprep.subr.mxu0 0.0
        %502 = vmatpush1.msra.mxu0 %v475
        %503 = vmatprep.subr.mxu0 0.0
        %504 = vmatpush1.msra.mxu0 %v476
        %505 = vmatprep.subr.mxu0 0.0
        %506 = vmatpush1.msra.mxu0 %v477
        %507 = vmatprep.subr.mxu0 0.0
        %508 = vmatpush1.msra.mxu0 %v478
        %509 = vmatprep.subr.mxu0 0.0
        %510 = vmatpush1.msra.mxu0 %v479
        %511 = vmatprep.subr.mxu0 0.0
        %512 = vmatpush1.msra.mxu0 %v480
        %513 = vmatprep.subr.mxu0 0.0
        %514 = vmatpush1.msra.mxu0 %v481
        %515 = vmatprep.subr.mxu0 0.0
        %516 = vmatpush1.msra.mxu0 %v482
        %517 = vmatprep.subr.mxu0 0.0
        %518 = vmatpush1.msra.mxu0 %v483
        %519 = vmatprep.subr.mxu0 0.0
        %520 = vmatpush1.msra.mxu0 %v484
        %521 = vmatprep.subr.mxu0 0.0
        %522 = vmatpush1.msra.mxu0 %v485
        %523 = vmatprep.subr.mxu0 0.0
        %524 = vmatpush1.msra.mxu0 %v486
        %525 = vmatprep.subr.mxu0 0.0
        %526 = vmatpush1.msra.mxu0 0.0
        %527 = vmatprep.subr.mxu0 0.0
        %528 = vmatpush1.msra.mxu0 0.0
        %529 = vmatprep.subr.mxu0 0.0
        %530 = vmatpush1.msra.mxu0 0.0
        %531 = vmatprep.subr.mxu0 0.0
        %532 = vmatpush1.msra.mxu0 0.0
        %533 = vmatprep.subr.mxu0 0.0
        %534 = vmatpush1.msra.mxu0 0.0
        %535 = vmatprep.subr.mxu0 0.0
        %536 = vmatpush1.msra.mxu0 0.0
        %537 = vmatprep.subr.mxu0 0.0
        %538 = vmatpush1.msra.mxu0 0.0
        %539 = vmatprep.subr.mxu0 0.0
        %540 = vmatpush1.msra.mxu0 0.0
        %541 = vmatprep.subr.mxu0 0.0
        %542 = vmatpush1.msra.mxu0 0.0
        %543 = vmatprep.subr.mxu0 0.0
        %544 = vmatpush1.msra.mxu0 0.0
        %545 = vmatprep.subr.mxu0 0.0
        %546 = vmatpush1.msra.mxu0 0.0
        %547 = vmatprep.subr.mxu0 0.0
        %548 = vmatpush1.msra.mxu0 0.0
        %549 = vmatprep.subr.mxu0 0.0
        %550 = vmatpush1.msra.mxu0 0.0
        %551 = vmatprep.subr.mxu0 0.0
        %552 = vmatpush1.msra.mxu0 0.0
        %553 = vmatprep.subr.mxu0 0.0
        %554 = vmatpush1.msra.mxu0 0.0
        %555 = vmatprep.subr.mxu0 0.0
        %556 = vmatpush1.msra.mxu0 0.0
        %557 = vmatprep.mubr.f32.mxu0 0.0
        %558 = vmatmul.mubr.f32.gmra.mrb[0].mxu0 %v455
        %v559 = vpop.f32.mrb[0].mxu0
        %v560 = vadd.f32 %v491, %v559
        %v561 = vpop.f32.mrb[0].mxu0
        %562 = vmatprep.mubr.f32.mxu0 0.0
        %563 = vmatmul.mubr.f32.gmra.mrb[0].mxu0 %v456
        %v564 = vpop.f32.mrb[0].mxu0
        %v565 = vadd.f32 %v491, %v564
        %v566 = vpop.f32.mrb[0].mxu0
        %567 = vmatprep.mubr.f32.mxu0 0.0
        %568 = vmatmul.mubr.f32.gmra.mrb[0].mxu0 %v457
        %v569 = vpop.f32.mrb[0].mxu0
        %v570 = vadd.f32 %v491, %v569
        %v571 = vpop.f32.mrb[0].mxu0
        %572 = vmatprep.mubr.f32.mxu0 0.0
        %573 = vmatmul.mubr.f32.gmra.mrb[0].mxu0 %v458
        %v574 = vpop.f32.mrb[0].mxu0
        %v575 = vadd.f32 %v491, %v574
        %v576 = vpop.f32.mrb[0].mxu0
        %577 = vmatprep.mubr.f32.mxu0 0.0
        %578 = vmatmul.mubr.f32.gmra.mrb[0].mxu0 %v459
        %v579 = vpop.f32.mrb[0].mxu0
        %v580 = vadd.f32 %v491, %v579
        %v581 = vpop.f32.mrb[0].mxu0
        %582 = vmatprep.mubr.f32.mxu0 0.0
        %583 = vmatmul.mubr.f32.gmra.mrb[0].mxu0 %v460
        %v584 = vpop.f32.mrb[0].mxu0
        %v585 = vadd.f32 %v491, %v584
        %v586 = vpop.f32.mrb[0].mxu0
        %587 = vmatprep.mubr.f32.mxu0 0.0
        %588 = vmatmul.mubr.f32.gmra.mrb[0].mxu0 %v461
        %v589 = vpop.f32.mrb[0].mxu0
        %v590 = vadd.f32 %v491, %v589
        %v591 = vpop.f32.mrb[0].mxu0
        %592 = vmatprep.mubr.f32.mxu0 0.0
        %593 = vmatmul.mubr.f32.gmra.mrb[0].mxu0 %v462
        %v594 = vpop.f32.mrb[0].mxu0
        %v595 = vadd.f32 %v491, %v594
        %v596 = vpop.f32.mrb[0].mxu0
        %597 = vmatprep.mubr.f32.mxu0 0.0
        %598 = vmatmul.mubr.f32.gmra.mrb[0].mxu0 %v463
        %v599 = vpop.f32.mrb[0].mxu0
        %v600 = vadd.f32 %v491, %v599
        %v601 = vpop.f32.mrb[0].mxu0
        %602 = vmatprep.mubr.f32.mxu0 0.0
        %603 = vmatmul.mubr.f32.gmra.mrb[0].mxu0 %v464
        %v604 = vpop.f32.mrb[0].mxu0
        %v605 = vadd.f32 %v491, %v604
        %v606 = vpop.f32.mrb[0].mxu0
        %607 = vmatprep.mubr.f32.mxu0 0.0
        %608 = vmatmul.mubr.f32.gmra.mrb[0].mxu0 %v465
        %v609 = vpop.f32.mrb[0].mxu0
        %v610 = vadd.f32 %v491, %v609
        %v611 = vpop.f32.mrb[0].mxu0
        %612 = vmatprep.mubr.f32.mxu0 0.0
        %613 = vmatmul.mubr.f32.gmra.mrb[0].mxu0 %v466
        %v614 = vpop.f32.mrb[0].mxu0
        %v615 = vadd.f32 %v491, %v614
        %v616 = vpop.f32.mrb[0].mxu0
        %617 = vmatprep.mubr.f32.mxu0 0.0
        %618 = vmatmul.mubr.f32.gmra.mrb[0].mxu0 %v467
        %v619 = vpop.f32.mrb[0].mxu0
        %v620 = vadd.f32 %v491, %v619
        %v621 = vpop.f32.mrb[0].mxu0
        %622 = vmatprep.mubr.f32.mxu0 0.0
        %623 = vmatmul.mubr.f32.gmra.mrb[0].mxu0 %v468
        %v624 = vpop.f32.mrb[0].mxu0
        %v625 = vadd.f32 %v491, %v624
        %v626 = vpop.f32.mrb[0].mxu0
        %627 = vmatprep.mubr.f32.mxu0 0.0
        %628 = vmatmul.mubr.f32.gmra.mrb[0].mxu0 %v469
        %v629 = vpop.f32.mrb[0].mxu0
        %v630 = vadd.f32 %v491, %v629
        %v631 = vpop.f32.mrb[0].mxu0
        %632 = vmatprep.mubr.f32.mxu0 0.0
        %633 = vmatmul.mubr.f32.gmra.mrb[0].mxu0 %v470
        %v634 = vpop.f32.mrb[0].mxu0
        %v635 = vadd.f32 %v491, %v634
        %v636 = vpop.f32.mrb[0].mxu0
        %637 = vdwg.mxu0
        %638 = vst [vmem:[%s260] sm:$0xff] %v560
        %639 = vst [vmem:[%s260 + $0x8] sm:$0xff] %v565
        %640 = vst [vmem:[%s260 + $0x10] sm:$0xff] %v570
        %641 = vst [vmem:[%s260 + $0x18] sm:$0xff] %v575
        %642 = vst [vmem:[%s260 + $0x20] sm:$0xff] %v580
        %643 = vst [vmem:[%s260 + $0x28] sm:$0xff] %v585
        %644 = vst [vmem:[%s260 + $0x30] sm:$0xff] %v590
        %645 = vst [vmem:[%s260 + $0x38] sm:$0xff] %v595
        %646 = vst [vmem:[%s260 + $0x40] sm:$0xff] %v600
        %647 = vst [vmem:[%s260 + $0x48] sm:$0xff] %v605
        %648 = vst [vmem:[%s260 + $0x50] sm:$0xff] %v610
        %649 = vst [vmem:[%s260 + $0x58] sm:$0xff] %v615
        %650 = vst [vmem:[%s260 + $0x60] sm:$0xff] %v620
        %651 = vst [vmem:[%s260 + $0x68] sm:$0xff] %v625
        %652 = vst [vmem:[%s260 + $0x70] sm:$0xff] %v630
        %653 = vst [vmem:[%s260 + $0x78] sm:$0xff] %v635
        %v654 = vrot.slane %v287, 7
        %v655 = vsub.f32 %v654, %v346
        %v656 = vmul.f32 %v655, %v369
        %v657 = vsel %vm349, %v656, 0.0
        %v658 = vadd.f32 %v657, 0.0
        %v659 = vrot.slane %v287, 6
        %v660 = vsub.f32 %v659, %v417
        %v661 = vmul.f32 %v660, %v438
        %v662 = vsel %vm418, %v661, 0.0
        %v663 = vadd.f32 %v658, %v662
        %v664 = vadd.f32 %v455, %v663
        %v665 = vld [vmem:[%s3] sm:$0xff]
        %v666 = vld [vmem:[%s3 + $0x8] sm:$0xff]
        %v667 = vld [vmem:[%s3 + $0x10] sm:$0xff]
        %v668 = vld [vmem:[%s3 + $0x18] sm:$0xff]
        %v669 = vld [vmem:[%s3 + $0x20] sm:$0xff]
        %v670 = vld [vmem:[%s3 + $0x28] sm:$0xff]
        %v671 = vld [vmem:[%s3 + $0x30] sm:$0xff]
        %v672 = vld [vmem:[%s3 + $0x38] sm:$0xff]
        %v673 = vld [vmem:[%s3 + $0x40] sm:$0xff]
        %v674 = vld [vmem:[%s3 + $0x48] sm:$0xff]
        %v675 = vld [vmem:[%s3 + $0x50] sm:$0xff]
        %v676 = vld [vmem:[%s3 + $0x58] sm:$0xff]
        %v677 = vld [vmem:[%s3 + $0x60] sm:$0xff]
        %v678 = vld [vmem:[%s3 + $0x68] sm:$0xff]
        %v679 = vld [vmem:[%s3 + $0x70] sm:$0xff]
        %v680 = vld [vmem:[%s3 + $0x78] sm:$0xff]
        %681 = vmatprep.subr.mxu0 0.0
        %682 = vmatpush1.msra.mxu0 %v665
        %683 = vmatprep.subr.mxu0 0.0
        %684 = vmatpush1.msra.mxu0 %v666
        %685 = vmatprep.subr.mxu0 0.0
        %686 = vmatpush1.msra.mxu0 %v667
        %687 = vmatprep.subr.mxu0 0.0
        %688 = vmatpush1.msra.mxu0 %v668
        %689 = vmatprep.subr.mxu0 0.0
        %690 = vmatpush1.msra.mxu0 %v669
        %691 = vmatprep.subr.mxu0 0.0
        %692 = vmatpush1.msra.mxu0 %v670
        %693 = vmatprep.subr.mxu0 0.0
        %694 = vmatpush1.msra.mxu0 %v671
        %695 = vmatprep.subr.mxu0 0.0
        %696 = vmatpush1.msra.mxu0 %v672
        %697 = vmatprep.subr.mxu0 0.0
        %698 = vmatpush1.msra.mxu0 %v673
        %699 = vmatprep.subr.mxu0 0.0
        %700 = vmatpush1.msra.mxu0 %v674
        %701 = vmatprep.subr.mxu0 0.0
        %702 = vmatpush1.msra.mxu0 %v675
        %703 = vmatprep.subr.mxu0 0.0
        %704 = vmatpush1.msra.mxu0 %v676
        %705 = vmatprep.subr.mxu0 0.0
        %706 = vmatpush1.msra.mxu0 %v677
        %707 = vmatprep.subr.mxu0 0.0
        %708 = vmatpush1.msra.mxu0 %v678
        %709 = vmatprep.subr.mxu0 0.0
        %710 = vmatpush1.msra.mxu0 %v679
        %711 = vmatprep.subr.mxu0 0.0
        %712 = vmatpush1.msra.mxu0 %v680
        %713 = vmatprep.subr.mxu0 0.0
        %714 = vmatpush1.msra.mxu0 0.0
        %715 = vmatprep.subr.mxu0 0.0
        %716 = vmatpush1.msra.mxu0 0.0
        %717 = vmatprep.subr.mxu0 0.0
        %718 = vmatpush1.msra.mxu0 0.0
        %719 = vmatprep.subr.mxu0 0.0
        %720 = vmatpush1.msra.mxu0 0.0
        %721 = vmatprep.subr.mxu0 0.0
        %722 = vmatpush1.msra.mxu0 0.0
        %723 = vmatprep.subr.mxu0 0.0
        %724 = vmatpush1.msra.mxu0 0.0
        %725 = vmatprep.subr.mxu0 0.0
        %726 = vmatpush1.msra.mxu0 0.0
        %727 = vmatprep.subr.mxu0 0.0
        %728 = vmatpush1.msra.mxu0 0.0
        %729 = vmatprep.subr.mxu0 0.0
        %730 = vmatpush1.msra.mxu0 0.0
        %731 = vmatprep.subr.mxu0 0.0
        %732 = vmatpush1.msra.mxu0 0.0
        %733 = vmatprep.subr.mxu0 0.0
        %734 = vmatpush1.msra.mxu0 0.0
        %735 = vmatprep.subr.mxu0 0.0
        %736 = vmatpush1.msra.mxu0 0.0
        %737 = vmatprep.subr.mxu0 0.0
        %738 = vmatpush1.msra.mxu0 0.0
        %739 = vmatprep.subr.mxu0 0.0
        %740 = vmatpush1.msra.mxu0 0.0
        %741 = vmatprep.subr.mxu0 0.0
        %742 = vmatpush1.msra.mxu0 0.0
        %743 = vmatprep.subr.mxu0 0.0
        %744 = vmatpush1.msra.mxu0 0.0
        %745 = vmatprep.mubr.f32.mxu0 0.0
        %746 = vmatmul.mubr.f32.gmra.mrb[0].mxu0 %v664
        %v747 = vpop.f32.mrb[0].mxu0
        %v748 = vadd.f32 %v491, %v747
        %v749 = vpop.f32.mrb[0].mxu0
        %750 = vdwg.mxu0
        %751 = vst [vmem:[%s260] sm:$0xff] %v748
        %s752 = sand.u32 %s156, 1
        %s753 = scalar_lea.sflag [#allocation5], %s752
        %s754 = sand.u32 %s156, 1
        %s755 = smul.addr %s754, 128
        %s756 = scalar_lea.vmem [#allocation6], %s755
        // Predicated region
        $region49: #{causal_depthwise_conv1d.1} parent=39 // pred_check
          %p757 = pneg %p166
        $region50: #{causal_depthwise_conv1d.1} parent=39 // pred_check_branch
          %759 = sbr.rel (%p757) target = $region52
        $region51: #{causal_depthwise_conv1d.1} parent=39 // pred_region
          %s760 = smul.u32 16, %s27
          %s762 = ssub.s32 2048, 2048
          %763 = vsyncadd %s753, %s762
          %s764 = smul.addr %s26, 32
          %s765 = sadd.s32 %s760, %s764
          %s766 = smul.addr %s765, 128
          %s767 = scalar_lea.hbm %s5, %s766
          %s768 = sshll.u32 %s756, 4
          %s769 = int_to_ptr.vmem [resolvable:$true] %s768
          %774 = dma.vmem_to_hbm [thread:$0]  %s769, 2048, %s767, %s753, 128, 128, 8
        $region52: #{causal_depthwise_conv1d.1} parent=39 // pred_fallthru
          _
      $region40: #{causal_depthwise_conv1d.1} parent=5 // pred_fallthru
        _
      %p775 = scmp.le.s32.totalorder 2, %s17
      // Predicated region
      $region53: #{causal_depthwise_conv1d.1} parent=5 // pred_check
        %p776 = pneg %p775
      $region54: #{causal_depthwise_conv1d.1} parent=5 // pred_check_branch
        %778 = sbr.rel (%p776) target = $region56
      $region55: #{causal_depthwise_conv1d.1} parent=5 // pred_region
        %s779 = ssub.s32 %s17, 2
        // Predicated region
        $region57: #{causal_depthwise_conv1d.1} parent=55 // pred_check
          %p780 = pneg %p172
        $region58: #{causal_depthwise_conv1d.1} parent=55 // pred_check_branch
          %782 = sbr.rel (%p780) target = $region60
        $region59: #{causal_depthwise_conv1d.1} parent=55 // pred_region
          %s783 = sand.u32 %s157, 1
          %s784 = scalar_lea.sflag [#allocation5], %s783
          %s785 = sand.u32 %s157, 1
          %s786 = smul.addr %s785, 128
          %s787 = scalar_lea.vmem [#allocation6], %s786
          %788 = dma.done %s784, 2048
        $region60: #{causal_depthwise_conv1d.1} parent=55 // pred_fallthru
          _
      $region56: #{causal_depthwise_conv1d.1} parent=5 // pred_fallthru
        _
    $region6: #{causal_depthwise_conv1d.1} parent=1 // loop_footer
      %s21 = sadd.s32 1, %s17
    $region7: #{causal_depthwise_conv1d.1} parent=1 // loop_footer_branch
      %16 = sbr.rel target = $region3
    $region8: #{causal_depthwise_conv1d.1} parent=1 // loop_exit
      _
    %789 = vsyncpa [#allocation4], 1
    %s790 = scalar_lea.sflag [#allocation4], 1
    %791 = vsyncpa %s790, 1
    %792 = vsyncpa [#allocation5], 1
    %s793 = scalar_lea.sflag [#allocation5], 1
    %794 = vsyncpa %s793, 1

</llo_original>
